<compile_context>
chip_gen: v7x
topology: tpu7x:2x2x1
jax: 0.10.0
libtpu: 0.0.40
codegen_flags: <defaults>
</compile_context>

<pallas_src>
import jax
import jax.numpy as jnp
from jax import lax
from jax.experimental import pallas as pl
from jax.experimental.pallas import tpu as pltpu

LN_EPS = 1e-5  # PyTorch nn.LayerNorm default


def residual_kernel(x_ref, w_ref, p_ref, o_ref):
    # x_ref: (tm, D) token tile (f32 or bf16); w_ref: (D, D) sublayer weight;
    # p_ref: (3, D) stacked [gamma, beta, bias] in f32; o_ref: (tm, D).
    x = x_ref[...].astype(jnp.float32)
    p = p_ref[...].astype(jnp.float32)
    gamma = p[0:1, :]
    beta = p[1:2, :]
    bias = p[2:3, :]

    # LayerNorm over d_model — statistics kept in f32 on all generations.
    mean = jnp.mean(x, axis=-1, keepdims=True)
    centered = x - mean
    var = jnp.mean(centered * centered, axis=-1, keepdims=True)
    xn = centered * lax.rsqrt(var + LN_EPS)
    xn = xn * gamma + beta

    # Sublayer: Linear(d_model, d_model). Operands cast to the weight dtype
    # (bf16 on v6e/v7x for full-rate MXU), accumulation in f32.
    y = jnp.dot(xn.astype(w_ref.dtype), w_ref[...],
                preferred_element_type=jnp.float32)
    y = y + bias

    # Dropout (eval mode) == identity; residual add stays in f32.
    o_ref[...] = (x + y).astype(o_ref.dtype)


def _vmem_capacity_bytes():
    # Narrow hardware probe only; falls back to the smallest per-TC capacity (v7x).
    try:
        return int(pltpu.get_tpu_info().vmem_capacity_bytes)
    except Exception:  # non-TPU tracing environments / older builds
        return 64 << 20


def residual_connection(x, w, b, gamma, beta, *, tm=1024, mxu_dtype=None):
    """x: (B, S, D); w: (D, D); b, gamma, beta: (D,). Returns (B, S, D).

    tm: row tile (tokens per grid step); large tiles amortize per-step overhead.
    mxu_dtype: optional dtype for the matmul operands (e.g. jnp.bfloat16 on v6e/v7x).
    The HBM-side activation/output dtype follows x.dtype (pass bf16 x for bf16 I/O);
    LayerNorm and the residual add are always computed in f32.
    """
    B, S, D = x.shape
    rows = B * S

    # Row tile: multiple of the sublane pack for x's dtype, clamped to the row count,
    # and (when rows allow) clamped so the grid has >= 2 steps for megacore sharding.
    sub = 8 if jnp.dtype(x.dtype).itemsize >= 4 else 16
    tm_eff = max(sub, min(int(tm), rows))
    tm_eff = sub * pl.cdiv(tm_eff, sub)
    if rows >= 2 * sub:
        tm_eff = min(tm_eff, sub * max(1, (rows // 2) // sub))
    grid = (pl.cdiv(rows, tm_eff),)

    x2 = x.reshape(rows, D)
    w_in = w.astype(mxu_dtype) if mxu_dtype is not None else w
    params = jnp.stack([gamma, beta, b], axis=0).astype(jnp.float32)  # (3, D)

    x_bytes = jnp.dtype(x2.dtype).itemsize
    w_bytes = jnp.dtype(w_in.dtype).itemsize
    o_bytes = jnp.dtype(x.dtype).itemsize

    # VMEM budget: double-buffered activation/output tiles, the resident weight/params,
    # and ~5 block-sized f32 intermediates (x upcast, centered, xn, y, residual).
    need = (2 * tm_eff * D * x_bytes
            + 2 * tm_eff * D * o_bytes
            + 2 * D * D * w_bytes
            + 2 * 3 * D * 4
            + 5 * tm_eff * D * 4)
    vmem_limit = min(max(int(1.2 * need) + (4 << 20), 16 << 20),
                     _vmem_capacity_bytes())

    cost = pl.CostEstimate(
        flops=2 * rows * D * D,
        transcendentals=0,
        bytes_accessed=rows * D * (x_bytes + o_bytes) + D * D * w_bytes + 3 * D * 4,
    )

    out2 = pl.pallas_call(
        residual_kernel,
        out_shape=jax.ShapeDtypeStruct((rows, D), x.dtype),
        grid_spec=pltpu.PrefetchScalarGridSpec(
            num_scalar_prefetch=0,
            grid=grid,
            in_specs=[
                pl.BlockSpec((tm_eff, D), lambda i: (i, 0)),   # x tile
                pl.BlockSpec((D, D), lambda i: (0, 0)),        # sublayer weight (resident)
                pl.BlockSpec((3, D), lambda i: (0, 0)),        # gamma/beta/bias
            ],
            out_specs=pl.BlockSpec((tm_eff, D), lambda i: (i, 0)),
        ),
        compiler_params=pltpu.CompilerParams(
            dimension_semantics=("parallel",),  # row axis shards across TCs on v7x
            vmem_limit_bytes=vmem_limit,
        ),
        cost_estimate=cost,
    )(x2, w_in, params)

    return out2.reshape(B, S, D)


def reference(x, w, b, gamma, beta):
    xf = x.astype(jnp.float32)
    mean = jnp.mean(xf, axis=-1, keepdims=True)
    var = jnp.mean((xf - mean) ** 2, axis=-1, keepdims=True)
    xn = (xf - mean) * lax.rsqrt(var + LN_EPS) * gamma + beta
    y = jnp.einsum("bsd,de->bse", xn, w) + b
    return (xf + y).astype(x.dtype)


if __name__ == "__main__":
    key = jax.random.PRNGKey(0)
    kx, kw, kb, kg, kbe, kx2 = jax.random.split(key, 6)

    D = 128
    # Deterministic sublayer (Linear) parameters.
    w = jax.random.normal(kw, (D, D), dtype=jnp.float32) * (1.0 / D ** 0.5)
    b = 0.01 * jax.random.normal(kb, (D,), dtype=jnp.float32)
    # LayerNorm parameters (PyTorch init gamma=1, beta=0), slightly perturbed.
    gamma = jnp.ones((D,), jnp.float32) + 0.05 * jax.random.normal(kg, (D,), dtype=jnp.float32)
    beta = 0.05 * jax.random.normal(kbe, (D,), dtype=jnp.float32)

    # Test 1: small canonical shape (B=2, S=8, d_model=128), f32 I/O, 2-step grid.
    x1 = jax.random.normal(kx, (2, 8, D), dtype=jnp.float32)
    out1 = jax.block_until_ready(residual_connection(x1, w, b, gamma, beta))
    ref1 = reference(x1, w, b, gamma, beta)
    assert out1.shape == x1.shape
    assert jnp.allclose(out1, ref1, atol=1e-4, rtol=1e-4), "mismatch vs reference (f32)"

    # Test 2: ragged token count (150 rows) — partial final block handled by masked
    # out-of-bounds output writes (no pad / slice HBM passes).
    x2 = jax.random.normal(kx2, (2, 75, D), dtype=jnp.float32)
    out2 = jax.block_until_ready(residual_connection(x2, w, b, gamma, beta, tm=64))
    ref2 = reference(x2, w, b, gamma, beta)
    assert out2.shape == x2.shape
    assert jnp.allclose(out2, ref2, atol=1e-4, rtol=1e-4), "mismatch vs reference (ragged)"

    # Test 3: bf16 activations/outputs at the HBM boundary + bf16 MXU weight
    # (v6e/v7x recommendation). LN statistics and the residual add stay in f32.
    x3 = x1.astype(jnp.bfloat16)
    out3 = jax.block_until_ready(
        residual_connection(x3, w, b, gamma, beta, mxu_dtype=jnp.bfloat16))
    ref3 = reference(x3, w, b, gamma, beta)
    assert out3.dtype == jnp.bfloat16
    assert jnp.allclose(out3.astype(jnp.float32), ref3.astype(jnp.float32),
                        atol=1e-1, rtol=1e-1), "mismatch vs reference (bf16 I/O)"

    print("KERNEL_OK")
</pallas_src>

<mosaic_0001>
module attributes {stable_mosaic.version = 11 : i64} {
  func.func @residual_kernel(%arg0: i32, %arg1: memref<8x128xf32, #tpu.memory_space<vmem>>, %arg2: memref<128x128xf32, #tpu.memory_space<vmem>>, %arg3: memref<3x128xf32, #tpu.memory_space<vmem>>, %arg4: memref<8x128xf32, #tpu.memory_space<vmem>>) attributes {dimension_semantics = [#tpu.dimension_semantics<parallel>], iteration_bounds = array<i64: 2>, scalar_prefetch = 0 : i64, scratch_operands = 0 : i64, tpu.core_type = #tpu.core_type<tc>, window_params = [{transform_indices = @transform_0, window_bounds = array<i64: 8, 128>}, {pipeline_mode = #tpu.pipeline_mode<synchronous>, transform_indices = @transform_1, window_bounds = array<i64: 128, 128>}, {pipeline_mode = #tpu.pipeline_mode<synchronous>, transform_indices = @transform_2, window_bounds = array<i64: 3, 128>}, {transform_indices = @transform_3, window_bounds = array<i64: 8, 128>}]} {
    %c0 = arith.constant 0 : index
    %c0_0 = arith.constant 0 : index
    %0 = vector.load %arg1[%c0, %c0_0] : memref<8x128xf32, #tpu.memory_space<vmem>>, vector<8x128xf32>
    %c0_1 = arith.constant 0 : index
    %c0_2 = arith.constant 0 : index
    %1 = vector.load %arg3[%c0_1, %c0_2] : memref<3x128xf32, #tpu.memory_space<vmem>>, vector<3x128xf32>
    %2 = vector.extract_strided_slice %1 {offsets = [0, 0], sizes = [1, 128], strides = [1, 1]} : vector<3x128xf32> to vector<1x128xf32>
    %3 = vector.extract_strided_slice %1 {offsets = [1, 0], sizes = [1, 128], strides = [1, 1]} : vector<3x128xf32> to vector<1x128xf32>
    %4 = vector.extract_strided_slice %1 {offsets = [2, 0], sizes = [1, 128], strides = [1, 1]} : vector<3x128xf32> to vector<1x128xf32>
    %cst = arith.constant dense<0.000000e+00> : vector<8xf32>
    %5 = vector.multi_reduction <add>, %0, %cst [1] : vector<8x128xf32> to vector<8xf32>
    %6 = vector.shape_cast %5 : vector<8xf32> to vector<8x1xf32>
    %cst_3 = arith.constant 1.280000e+02 : f32
    %7 = vector.broadcast %cst_3 : f32 to vector<8x1xf32>
    %8 = arith.divf %6, %7 : vector<8x1xf32>
    %9 = vector.broadcast %8 : vector<8x1xf32> to vector<8x128xf32>
    %10 = arith.subf %0, %9 : vector<8x128xf32>
    %11 = arith.mulf %10, %10 : vector<8x128xf32>
    %cst_4 = arith.constant dense<0.000000e+00> : vector<8xf32>
    %12 = vector.multi_reduction <add>, %11, %cst_4 [1] : vector<8x128xf32> to vector<8xf32>
    %13 = vector.shape_cast %12 : vector<8xf32> to vector<8x1xf32>
    %cst_5 = arith.constant 1.280000e+02 : f32
    %14 = vector.broadcast %cst_5 : f32 to vector<8x1xf32>
    %15 = arith.divf %13, %14 : vector<8x1xf32>
    %cst_6 = arith.constant 9.99999974E-6 : f32
    %16 = vector.broadcast %cst_6 : f32 to vector<8x1xf32>
    %17 = arith.addf %15, %16 : vector<8x1xf32>
    %18 = math.rsqrt %17 : vector<8x1xf32>
    %19 = vector.broadcast %18 : vector<8x1xf32> to vector<8x128xf32>
    %20 = arith.mulf %10, %19 : vector<8x128xf32>
    %21 = vector.broadcast %2 : vector<1x128xf32> to vector<8x128xf32>
    %22 = arith.mulf %20, %21 : vector<8x128xf32>
    %23 = vector.broadcast %3 : vector<1x128xf32> to vector<8x128xf32>
    %24 = arith.addf %22, %23 : vector<8x128xf32>
    %c0_7 = arith.constant 0 : index
    %c0_8 = arith.constant 0 : index
    %25 = vector.load %arg2[%c0_7, %c0_8] : memref<128x128xf32, #tpu.memory_space<vmem>>, vector<128x128xf32>
    %cst_9 = arith.constant dense<0.000000e+00> : vector<8x128xf32>
    %26 = tpu.matmul %24, %25, %cst_9 {dimension_numbers = #tpu.dot_dimension_numbers<[1], [0], [0], [1], [0, 0, 1, 1], [], []>} : vector<8x128xf32>, vector<128x128xf32>, vector<8x128xf32> -> vector<8x128xf32>
    %27 = vector.broadcast %4 : vector<1x128xf32> to vector<8x128xf32>
    %28 = arith.addf %26, %27 : vector<8x128xf32>
    %29 = arith.addf %0, %28 : vector<8x128xf32>
    %c0_10 = arith.constant 0 : index
    %c0_11 = arith.constant 0 : index
    %30 = vector.load %arg4[%c0_10, %c0_11] : memref<8x128xf32, #tpu.memory_space<vmem>>, vector<8x128xf32>
    tpu.vector_store %arg4[%c0_10, %c0_11], %29 {strides = array<i32>} : memref<8x128xf32, #tpu.memory_space<vmem>>, vector<8x128xf32>,
    return
  }
  func.func @transform_0(%arg0: i32) -> (i32, i32) {
    %c0_i32 = arith.constant 0 : i32
    %c0_i32_0 = arith.constant 0 : i32
    return %arg0, %c0_i32 : i32, i32
  }
  func.func @transform_1(%arg0: i32) -> (i32, i32) {
    %c0_i32 = arith.constant 0 : i32
    %c0_i32_0 = arith.constant 0 : i32
    %c0_i32_1 = arith.constant 0 : i32
    return %c0_i32, %c0_i32_0 : i32, i32
  }
  func.func @transform_2(%arg0: i32) -> (i32, i32) {
    %c0_i32 = arith.constant 0 : i32
    %c0_i32_0 = arith.constant 0 : i32
    %c0_i32_1 = arith.constant 0 : i32
    return %c0_i32, %c0_i32_0 : i32, i32
  }
  func.func @transform_3(%arg0: i32) -> (i32, i32) {
    %c0_i32 = arith.constant 0 : i32
    %c0_i32_0 = arith.constant 0 : i32
    return %arg0, %c0_i32 : i32, i32
  }
}

</mosaic_0001>

<llo_original>
// kernel: tpu_custom_call.1
$region0: #{tpu_custom_call.1}
  #allocation0 [shape = 'u32[]', space=smem, size = 0x4, offset = 0x4, fixed_abs, tag = 'smem constant byte address 0x4 - core index']
  #allocation1 [shape = 'u32[144,128]{1,0:T(1,128)}', space=vmem, size = 0x12000, scoped, tag = 'internal scratch']
  %s0 = inlined_call_operand.hbm [shape: f32[16,128], index: 0, kind: input, shape index: {}]
  %s1 = inlined_call_operand.hbm [shape: f32[128,128], index: 1, kind: input, shape index: {}]
  %s2 = inlined_call_operand.vmem [shape: f32[3,128], index: 2, kind: input, shape index: {}]
  %s3 = inlined_call_operand.hbm [shape: f32[16,128], index: 3, kind: output, shape index: {}]
  %s4 = sld [smem:[#allocation0]]
  $region53: #{tpu_custom_call.1} parent=0
    _
  %s6 = ssub.s32 1, %s4
  %s7 = scalar_select 0, %s6, %s4
  $region1: #{tpu_custom_call.1} parent=0
    #allocation2 [shape = 'u8[8192]{0}', space=vmem, size = 0x2000, scoped, tag = 'input window, operand 0']
    #allocation3 [shape = 's32[2]{0}', space=sflag, size = 0x8, scoped, tag = 'scoped memory for tpu_custom_call.1']
    #allocation4 [shape = 's32[2]{0}', space=sflag, size = 0x8, scoped, tag = 'scoped memory for tpu_custom_call.1']
    #allocation5 [shape = 'u8[65536]{0}', space=vmem, size = 0x10000, scoped, tag = 'input window, operand 1, single buffered']
    #allocation6 [shape = 's32[1]{0}', space=sflag, size = 0x4, scoped, tag = 'scoped memory for tpu_custom_call.1']
    #allocation7 [shape = 'u8[8192]{0}', space=vmem, size = 0x2000, scoped, tag = 'output window, operand 0']
    %8 = vsyncpa [#allocation3], 0
    %s9 = scalar_lea.sflag [#allocation3], 1
    %10 = vsyncpa %s9, 0
    %11 = vsyncpa [#allocation6], 0
    %12 = vsyncpa [#allocation4], 0
    %s13 = scalar_lea.sflag [#allocation4], 1
    %14 = vsyncpa %s13, 0
    loop: start=0, step=1, limit=4
    $region2: #{tpu_custom_call.1} parent=1 // loop_pre_header
      _
    $region3: #{tpu_custom_call.1} parent=1 // loop_header
      %s16 = sphi 0, %s20
      %p17 = scmp.ge.s32.totalorder %s16, 4
      %s26 = sphi 0, %s28
      %s29 = sphi 0, %s26
      %s30 = sphi 0, %s29
      %s46 = sphi 0, %s30
      %s50 = sphi 0, %s50
      %s52 = sphi 0, %s50
      %s53 = sphi 0, %s52
      %s67 = sphi 0, %s53
      %s71 = sphi 0, %s71
      %s73 = sphi 0, %s71
      %s74 = sphi 0, %s73
      %s88 = sphi 0, %s74
      %s94 = sphi 0, %s96
      %s97 = sphi 0, %s94
      %s98 = sphi 0, %s97
      %s114 = sphi 0, %s98
    $region4: #{tpu_custom_call.1} parent=1 // loop_header_branch
      %19 = sbr.rel (%p17) target = $region8
    $region5: #{tpu_custom_call.1} parent=1 // loop_body
      %s21 = ssub.s32 %s16, 1
      %s22 = ssub.s32 %s16, 2
      %s23 = sadd.s32 %s16, 1
      %s24 = ssub.s32 %s16, %s23
      %p25 = scmp.eq.s32.totalorder %s24, 0
      %s27 = sadd.s32 %s26, 1
      %s28 = scalar_select %p25, %s26, %s27
      %p31 = pneg %p25
      %p32 = scmp.eq.s32.totalorder %s16, 1
      %p33 = por %p31, %p32
      %p34 = scmp.ne.s32.totalorder %s26, %s29
      %p35 = scmp.eq.s32.totalorder %s16, 0
      %p36 = por %p34, %p35
      %p37 = scmp.ne.s32.totalorder %s26, %s29
      %p38 = scmp.eq.s32.totalorder %s21, 1
      %p39 = por %p37, %p38
      %p40 = scmp.ne.s32.totalorder %s29, %s30
      %p41 = scmp.eq.s32.totalorder %s21, 0
      %p42 = por %p40, %p41
      %p43 = scmp.ne.s32.totalorder %s29, %s30
      %p44 = scmp.eq.s32.totalorder %s22, 1
      %p45 = por %p43, %p44
      %p47 = scmp.ne.s32.totalorder %s30, %s46
      %p48 = scmp.eq.s32.totalorder %s22, 0
      %p49 = por %p47, %p48
      %s51 = sadd.s32 %s50, 1
      %p54 = scmp.eq.s32.totalorder %s16, 1
      %p55 = scmp.ne.s32.totalorder %s50, %s52
      %p56 = scmp.eq.s32.totalorder %s16, 0
      %p57 = por %p55, %p56
      %p58 = scmp.ne.s32.totalorder %s50, %s52
      %p59 = scmp.eq.s32.totalorder %s21, 1
      %p60 = por %p58, %p59
      %p61 = scmp.ne.s32.totalorder %s52, %s53
      %p62 = scmp.eq.s32.totalorder %s21, 0
      %p63 = por %p61, %p62
      %p64 = scmp.ne.s32.totalorder %s52, %s53
      %p65 = scmp.eq.s32.totalorder %s22, 1
      %p66 = por %p64, %p65
      %p68 = scmp.ne.s32.totalorder %s53, %s67
      %p69 = scmp.eq.s32.totalorder %s22, 0
      %p70 = por %p68, %p69
      %s72 = sadd.s32 %s71, 1
      %p75 = scmp.eq.s32.totalorder %s16, 1
      %p76 = scmp.ne.s32.totalorder %s71, %s73
      %p77 = scmp.eq.s32.totalorder %s16, 0
      %p78 = por %p76, %p77
      %p79 = scmp.ne.s32.totalorder %s71, %s73
      %p80 = scmp.eq.s32.totalorder %s21, 1
      %p81 = por %p79, %p80
      %p82 = scmp.ne.s32.totalorder %s73, %s74
      %p83 = scmp.eq.s32.totalorder %s21, 0
      %p84 = por %p82, %p83
      %p85 = scmp.ne.s32.totalorder %s73, %s74
      %p86 = scmp.eq.s32.totalorder %s22, 1
      %p87 = por %p85, %p86
      %p89 = scmp.ne.s32.totalorder %s74, %s88
      %p90 = scmp.eq.s32.totalorder %s22, 0
      %p91 = por %p89, %p90
      %s92 = ssub.s32 %s16, %s23
      %p93 = scmp.eq.s32.totalorder %s92, 0
      %s95 = sadd.s32 %s94, 1
      %s96 = scalar_select %p93, %s94, %s95
      %p99 = pneg %p93
      %p100 = scmp.eq.s32.totalorder %s16, 1
      %p101 = por %p99, %p100
      %p102 = scmp.ne.s32.totalorder %s94, %s97
      %p103 = scmp.eq.s32.totalorder %s16, 0
      %p104 = por %p102, %p103
      %p105 = scmp.ne.s32.totalorder %s94, %s97
      %p106 = scmp.eq.s32.totalorder %s21, 1
      %p107 = por %p105, %p106
      %p108 = scmp.ne.s32.totalorder %s97, %s98
      %p109 = scmp.eq.s32.totalorder %s21, 0
      %p110 = por %p108, %p109
      %p111 = scmp.ne.s32.totalorder %s97, %s98
      %p112 = scmp.eq.s32.totalorder %s22, 1
      %p113 = por %p111, %p112
      %p115 = scmp.ne.s32.totalorder %s98, %s114
      %p116 = scmp.eq.s32.totalorder %s22, 0
      %p117 = por %p115, %p116
      %p118 = scmp.le.s32.totalorder 1, %s16
      %p119 = scmp.lt.s32.totalorder %s16, 3
      %p120 = pnand %p118, %p119
      %p121 = pneg %p120
      // Predicated region
      $region9: #{tpu_custom_call.1} parent=5 // pred_check
        _
      $region10: #{tpu_custom_call.1} parent=5 // pred_check_branch
        %123 = sbr.rel (%p120) target = $region12
      $region11: #{tpu_custom_call.1} parent=5 // pred_region
        %s124 = ssub.s32 %s16, 1
        // Predicated region
        $region13: #{tpu_custom_call.1} parent=11 // pred_check
          %p125 = pneg %p63
        $region14: #{tpu_custom_call.1} parent=11 // pred_check_branch
          %127 = sbr.rel (%p125) target = $region16
        $region15: #{tpu_custom_call.1} parent=11 // pred_region
          %s129 = ssub.s32 2048, 2048
          %130 = vsyncadd [#allocation6], %s129
          %s131 = sshll.u32 [#allocation5], 4
          %s132 = int_to_ptr.vmem [resolvable:$true] %s131
          %137 = dma.hbm_to_vmem [thread:$0]  %s1, 2048, %s132, [#allocation6], 128, 128, 8
        $region16: #{tpu_custom_call.1} parent=11 // pred_fallthru
          _
        // Predicated region
        $region17: #{tpu_custom_call.1} parent=11 // pred_check
          %p138 = pneg %p84
        $region18: #{tpu_custom_call.1} parent=11 // pred_check_branch
          %140 = sbr.rel (%p138) target = $region20
        $region19: #{tpu_custom_call.1} parent=11 // pred_region
          _
        $region20: #{tpu_custom_call.1} parent=11 // pred_fallthru
          _
      $region12: #{tpu_custom_call.1} parent=5 // pred_fallthru
        _
      %p141 = scmp.lt.s32.totalorder %s16, 2
      // Predicated region
      $region21: #{tpu_custom_call.1} parent=5 // pred_check
        %p142 = pneg %p141
      $region22: #{tpu_custom_call.1} parent=5 // pred_check_branch
        %144 = sbr.rel (%p142) target = $region24
      $region23: #{tpu_custom_call.1} parent=5 // pred_region
        // Predicated region
        $region25: #{tpu_custom_call.1} parent=23 // pred_check
          %p145 = pneg %p36
        $region26: #{tpu_custom_call.1} parent=23 // pred_check_branch
          %147 = sbr.rel (%p145) target = $region28
        $region27: #{tpu_custom_call.1} parent=23 // pred_region
          %s148 = sand.u32 %s26, 1
          %s149 = scalar_lea.sflag [#allocation3], %s148
          %s150 = sand.u32 %s26, 1
          %s151 = smul.addr %s150, 8
          %s152 = scalar_lea.vmem [#allocation2], %s151
          %s154 = ssub.s32 128, 128
          %155 = vsyncadd %s149, %s154
          %s156 = smul.addr %s16, 128
          %s157 = scalar_lea.hbm %s0, %s156
          %s159 = sshll.u32 %s152, 4
          %s160 = int_to_ptr.vmem [resolvable:$true] %s159
          %162 = dma.hbm_to_vmem [thread:$0]  %s157, 128, %s160, %s149
        $region28: #{tpu_custom_call.1} parent=23 // pred_fallthru
          _
      $region24: #{tpu_custom_call.1} parent=5 // pred_fallthru
        _
      %p163 = scmp.le.s32.totalorder 1, %s16
      %p164 = scmp.lt.s32.totalorder %s16, 3
      %p165 = pnand %p163, %p164
      %p166 = pneg %p165
      // Predicated region
      $region29: #{tpu_custom_call.1} parent=5 // pred_check
        _
      $region30: #{tpu_custom_call.1} parent=5 // pred_check_branch
        %168 = sbr.rel (%p165) target = $region32
      $region31: #{tpu_custom_call.1} parent=5 // pred_region
        %s169 = ssub.s32 %s16, 1
        %s170 = sand.u32 %s29, 1
        %s171 = scalar_lea.sflag [#allocation3], %s170
        %s172 = sand.u32 %s29, 1
        %s173 = smul.addr %s172, 8
        %s174 = scalar_lea.vmem [#allocation2], %s173
        // Predicated region
        $region33: #{tpu_custom_call.1} parent=31 // pred_check
          %p175 = pneg %p42
        $region34: #{tpu_custom_call.1} parent=31 // pred_check_branch
          %177 = sbr.rel (%p175) target = $region36
        $region35: #{tpu_custom_call.1} parent=31 // pred_region
          %178 = dma.done %s171, 128
        $region36: #{tpu_custom_call.1} parent=31 // pred_fallthru
          _
        // Predicated region
        $region37: #{tpu_custom_call.1} parent=31 // pred_check
          %p179 = pneg %p63
        $region38: #{tpu_custom_call.1} parent=31 // pred_check_branch
          %181 = sbr.rel (%p179) target = $region40
        $region39: #{tpu_custom_call.1} parent=31 // pred_region
          %182 = dma.done [#allocation6], 2048
        $region40: #{tpu_custom_call.1} parent=31 // pred_fallthru
          _
        %s183 = sand.u32 %s29, 1
        %s184 = scalar_lea.sflag [#allocation3], %s183
        %s185 = sand.u32 %s29, 1
        %s186 = smul.addr %s185, 8
        %s187 = scalar_lea.vmem [#allocation2], %s186
        %p188 = pneg %p42
        %p189 = pneg %p39
        %p190 = pneg %p63
        %p191 = pneg %p60
        %p192 = pneg %p84
        %p193 = pneg %p81
        %p194 = pneg %p110
        %p195 = pneg %p107
        %s196 = sand.u32 %s97, 1
        %s197 = scalar_lea.sflag [#allocation4], %s196
        %s198 = sand.u32 %s97, 1
        %s199 = smul.addr %s198, 8
        %s200 = scalar_lea.vmem [#allocation7], %s199
        %v201 = vld [vmem:[%s174] sm:$0xff]
        %v202 = vld [vmem:[%s2] sm:$0x7]
        %203 = vadd.xlane.f32.xlu0 %v201
        %v204 = vpop.xlane.xlu0 %203
        %v205 = vrcp.pop 128.0
        %v206 = vmul.f32 %v204, %v205
        %v207 = vsub.f32 %v201, %v206
        %v208 = vmul.f32 %v207, %v207
        %209 = vadd.xlane.f32.xlu0 %v208
        %v210 = vpop.xlane.xlu0 %209
        %v211 = vmul.f32 %v210, %v205
        %v212 = vadd.f32 %v211, 1e-05
        %v213 = vrsqrt.pop %v212
        %v214 = vmul.f32 %v207, %v213
        %v215 = vlaneseq
        %v216 = vshrl.u32 %v215, 7
        %v217 = vsub.s32 0, %v216
        %v218 = vrot.slane %v202, %v217
        %v219 = vmul.f32 %v214, %v218
        %v220 = vlaneseq
        %v221 = vshrl.u32 %v220, 7
        %v222 = vsub.s32 1, %v221
        %v223 = vrot.slane %v202, %v222
        %v224 = vadd.f32 %v219, %v223
        %v225 = vld [vmem:[#allocation5] sm:$0xff]
        %v226 = vld [vmem:[#allocation5 + $0x8] sm:$0xff]
        %v227 = vld [vmem:[#allocation5 + $0x10] sm:$0xff]
        %v228 = vld [vmem:[#allocation5 + $0x18] sm:$0xff]
        %v229 = vld [vmem:[#allocation5 + $0x20] sm:$0xff]
        %v230 = vld [vmem:[#allocation5 + $0x28] sm:$0xff]
        %v231 = vld [vmem:[#allocation5 + $0x30] sm:$0xff]
        %v232 = vld [vmem:[#allocation5 + $0x38] sm:$0xff]
        %v233 = vld [vmem:[#allocation5 + $0x40] sm:$0xff]
        %v234 = vld [vmem:[#allocation5 + $0x48] sm:$0xff]
        %v235 = vld [vmem:[#allocation5 + $0x50] sm:$0xff]
        %v236 = vld [vmem:[#allocation5 + $0x58] sm:$0xff]
        %v237 = vld [vmem:[#allocation5 + $0x60] sm:$0xff]
        %v238 = vld [vmem:[#allocation5 + $0x68] sm:$0xff]
        %v239 = vld [vmem:[#allocation5 + $0x70] sm:$0xff]
        %v240 = vld [vmem:[#allocation5 + $0x78] sm:$0xff]
        %v241 = vlaneseq
        %v242 = vshrl.u32 %v241, 7
        %v243 = vsub.s32 2, %v242
        %v244 = vrot.slane %v202, %v243
        %245 = vmatprep.subr.mxu0 0.0
        %246 = vmatpush1.msra.mxu0 %v225
        %247 = vmatprep.subr.mxu0 0.0
        %248 = vmatpush1.msra.mxu0 %v226
        %249 = vmatprep.subr.mxu0 0.0
        %250 = vmatpush1.msra.mxu0 %v227
        %251 = vmatprep.subr.mxu0 0.0
        %252 = vmatpush1.msra.mxu0 %v228
        %253 = vmatprep.subr.mxu0 0.0
        %254 = vmatpush1.msra.mxu0 %v229
        %255 = vmatprep.subr.mxu0 0.0
        %256 = vmatpush1.msra.mxu0 %v230
        %257 = vmatprep.subr.mxu0 0.0
        %258 = vmatpush1.msra.mxu0 %v231
        %259 = vmatprep.subr.mxu0 0.0
        %260 = vmatpush1.msra.mxu0 %v232
        %261 = vmatprep.subr.mxu0 0.0
        %262 = vmatpush1.msra.mxu0 %v233
        %263 = vmatprep.subr.mxu0 0.0
        %264 = vmatpush1.msra.mxu0 %v234
        %265 = vmatprep.subr.mxu0 0.0
        %266 = vmatpush1.msra.mxu0 %v235
        %267 = vmatprep.subr.mxu0 0.0
        %268 = vmatpush1.msra.mxu0 %v236
        %269 = vmatprep.subr.mxu0 0.0
        %270 = vmatpush1.msra.mxu0 %v237
        %271 = vmatprep.subr.mxu0 0.0
        %272 = vmatpush1.msra.mxu0 %v238
        %273 = vmatprep.subr.mxu0 0.0
        %274 = vmatpush1.msra.mxu0 %v239
        %275 = vmatprep.subr.mxu0 0.0
        %276 = vmatpush1.msra.mxu0 %v240
        %277 = vmatprep.subr.mxu0 0.0
        %278 = vmatpush1.msra.mxu0 0.0
        %279 = vmatprep.subr.mxu0 0.0
        %280 = vmatpush1.msra.mxu0 0.0
        %281 = vmatprep.subr.mxu0 0.0
        %282 = vmatpush1.msra.mxu0 0.0
        %283 = vmatprep.subr.mxu0 0.0
        %284 = vmatpush1.msra.mxu0 0.0
        %285 = vmatprep.subr.mxu0 0.0
        %286 = vmatpush1.msra.mxu0 0.0
        %287 = vmatprep.subr.mxu0 0.0
        %288 = vmatpush1.msra.mxu0 0.0
        %289 = vmatprep.subr.mxu0 0.0
        %290 = vmatpush1.msra.mxu0 0.0
        %291 = vmatprep.subr.mxu0 0.0
        %292 = vmatpush1.msra.mxu0 0.0
        %293 = vmatprep.subr.mxu0 0.0
        %294 = vmatpush1.msra.mxu0 0.0
        %295 = vmatprep.subr.mxu0 0.0
        %296 = vmatpush1.msra.mxu0 0.0
        %297 = vmatprep.subr.mxu0 0.0
        %298 = vmatpush1.msra.mxu0 0.0
        %299 = vmatprep.subr.mxu0 0.0
        %300 = vmatpush1.msra.mxu0 0.0
        %301 = vmatprep.subr.mxu0 0.0
        %302 = vmatpush1.msra.mxu0 0.0
        %303 = vmatprep.subr.mxu0 0.0
        %304 = vmatpush1.msra.mxu0 0.0
        %305 = vmatprep.subr.mxu0 0.0
        %306 = vmatpush1.msra.mxu0 0.0
        %307 = vmatprep.subr.mxu0 0.0
        %308 = vmatpush1.msra.mxu0 0.0
        %309 = vmatprep.mubr.f32.mxu0 0.0
        %310 = vmatmul.mubr.f32.gmra.mrb[0].mxu0 %v224
        %v311 = vpop.f32.mrb[0].mxu0
        %v312 = vadd.f32 %v244, %v311
        %v313 = vpop.f32.mrb[0].mxu0
        %314 = vdwg.mxu0
        %v315 = vadd.f32 %v201, %v312
        %316 = vst [vmem:[%s200] sm:$0xff] %v315
        %s317 = sand.u32 %s97, 1
        %s318 = scalar_lea.sflag [#allocation4], %s317
        %s319 = sand.u32 %s97, 1
        %s320 = smul.addr %s319, 8
        %s321 = scalar_lea.vmem [#allocation7], %s320
        // Predicated region
        $region41: #{tpu_custom_call.1} parent=31 // pred_check
          %p322 = pneg %p107
        $region42: #{tpu_custom_call.1} parent=31 // pred_check_branch
          %324 = sbr.rel (%p322) target = $region44
        $region43: #{tpu_custom_call.1} parent=31 // pred_region
          %s326 = ssub.s32 128, 128
          %327 = vsyncadd %s318, %s326
          %s328 = smul.addr %s21, 128
          %s329 = scalar_lea.hbm %s3, %s328
          %s331 = sshll.u32 %s321, 4
          %s332 = int_to_ptr.vmem [resolvable:$true] %s331
          %334 = dma.vmem_to_hbm [thread:$0]  %s332, 128, %s329, %s318
        $region44: #{tpu_custom_call.1} parent=31 // pred_fallthru
          _
      $region32: #{tpu_custom_call.1} parent=5 // pred_fallthru
        _
      %p335 = scmp.le.s32.totalorder 2, %s16
      // Predicated region
      $region45: #{tpu_custom_call.1} parent=5 // pred_check
        %p336 = pneg %p335
      $region46: #{tpu_custom_call.1} parent=5 // pred_check_branch
        %338 = sbr.rel (%p336) target = $region48
      $region47: #{tpu_custom_call.1} parent=5 // pred_region
        %s339 = ssub.s32 %s16, 2
        // Predicated region
        $region49: #{tpu_custom_call.1} parent=47 // pred_check
          %p340 = pneg %p113
        $region50: #{tpu_custom_call.1} parent=47 // pred_check_branch
          %342 = sbr.rel (%p340) target = $region52
        $region51: #{tpu_custom_call.1} parent=47 // pred_region
          %s343 = sand.u32 %s98, 1
          %s344 = scalar_lea.sflag [#allocation4], %s343
          %s345 = sand.u32 %s98, 1
          %s346 = smul.addr %s345, 8
          %s347 = scalar_lea.vmem [#allocation7], %s346
          %348 = dma.done %s344, 128
        $region52: #{tpu_custom_call.1} parent=47 // pred_fallthru
          _
      $region48: #{tpu_custom_call.1} parent=5 // pred_fallthru
        _
    $region6: #{tpu_custom_call.1} parent=1 // loop_footer
      %s20 = sadd.s32 1, %s16
    $region7: #{tpu_custom_call.1} parent=1 // loop_footer_branch
      %15 = sbr.rel target = $region3
    $region8: #{tpu_custom_call.1} parent=1 // loop_exit
      _
    %349 = vsyncpa [#allocation3], 1
    %s350 = scalar_lea.sflag [#allocation3], 1
    %351 = vsyncpa %s350, 1
    %352 = vsyncpa [#allocation6], 1
    %353 = vsyncpa [#allocation4], 1
    %s354 = scalar_lea.sflag [#allocation4], 1
    %355 = vsyncpa %s354, 1

</llo_original>
